<compile_context>
chip_gen: v5e
topology: v5e:2x2
jax: 0.10.0
libtpu: 0.0.40
codegen_flags: <defaults>
</compile_context>

<pallas_src>
import functools
import math

import numpy as np
import jax
import jax.numpy as jnp
from jax.experimental import pallas as pl
from jax.experimental.pallas import tpu as pltpu


FEAT_ALIGN = 16    # feature dims padded to multiples of 16 (bf16 packing friendly)
BATCH_ALIGN = 16   # batch tile multiple of 16 (bf16 sublane tiling)


def _round_up(x, m):
    return ((x + m - 1) // m) * m


def _apply_act(h, act):
    if act == "relu":
        return jnp.maximum(h, 0.0)
    if act == "elu":
        return jnp.where(h > 0.0, h, jnp.expm1(h))
    if act == "sigmoid":
        return jax.nn.sigmoid(h)
    return h  # "none"


# ---------------------------------------------------------------------------
# Kernel: fused encoder+decoder MLP for one (cluster, batch-tile) grid point.
# ---------------------------------------------------------------------------
def _fused_hae_kernel(x_ref, *refs, acts, out_dims, compute_dtype):
    """refs = (w_0, ..., w_{L-1}, b_stack, o_ref)

    x_ref    : (1, TB, in0)            bf16   batch tile of this cluster's features
    w_l      : (1, in_l, out_l)        bf16   pre-transposed weight (resident per cluster)
    b_stack  : (1, L, out_max)         f32    all biases of this cluster
    o_ref    : (1, TB, out_last)       f32
    """
    o_ref = refs[-1]
    b_ref = refs[-2]
    w_refs = refs[:-2]

    bias_mat = b_ref[0]                      # (L, out_max) f32, loaded once
    h = x_ref[0]                             # (TB, in0) bf16
    num_layers = len(acts)
    for l in range(num_layers):
        w = w_refs[l][0]                     # (in_l, out_l) bf16
        acc = jnp.dot(h, w, preferred_element_type=jnp.float32)   # MXU, f32 accum
        acc = acc + bias_mat[l:l + 1, :out_dims[l]]                # f32 bias add
        acc = _apply_act(acc, acts[l])
        if l + 1 < num_layers:
            h = acc.astype(compute_dtype)    # stay on-chip, bf16 between layers
        else:
            o_ref[0] = acc.astype(o_ref.dtype)


# ---------------------------------------------------------------------------
# Host-side parameter packing (done once).
# ---------------------------------------------------------------------------
def prepare_fused_params(params, clusters, compute_dtype=jnp.bfloat16):
    """Pack per-cluster layer lists into per-layer cluster-stacked arrays.

    Returns (w_stacks, b_stack, meta):
      w_stacks[l] : (C, in_l, out_l)  compute_dtype, weight stored TRANSPOSED (in, out)
      b_stack     : (C, L, out_max)   float32
    Zero padding of the extra rows/cols keeps padded lanes exactly zero through
    relu/elu/none layers; sigmoid only appears on the last layer, whose padded
    columns are discarded by the scatter.
    """
    acts = params[0][1]
    for _, a in params:
        assert a == acts, "all clusters must share the same layer structure"
    C = len(params)
    L = len(acts)

    in_dims, out_dims = [], []
    for l in range(L):
        fin = max(p[0][l][0].shape[1] for p in params)
        fout = max(p[0][l][0].shape[0] for p in params)
        in_dims.append(_round_up(fin, FEAT_ALIGN))
        out_dims.append(_round_up(fout, FEAT_ALIGN))
    for l in range(L - 1):
        assert out_dims[l] == in_dims[l + 1]
    out_max = max(out_dims)

    w_stacks = []
    for l in range(L):
        ws = []
        for layers, _ in params:
            W, _ = layers[l]
            fout, fin = W.shape
            Wt = jnp.zeros((in_dims[l], out_dims[l]), jnp.float32)
            Wt = Wt.at[:fin, :fout].set(W.astype(jnp.float32).T)   # pre-transpose
            ws.append(Wt)
        w_stacks.append(jnp.stack(ws).astype(compute_dtype))        # (C, in_l, out_l)

    b_rows = []
    for layers, _ in params:
        rows = []
        for l in range(L):
            _, b = layers[l]
            rows.append(jnp.pad(b.astype(jnp.float32), (0, out_max - b.shape[0])))
        b_rows.append(jnp.stack(rows))
    b_stack = jnp.stack(b_rows)                                      # (C, L, out_max)

    meta = dict(acts=tuple(acts), in_dims=tuple(in_dims), out_dims=tuple(out_dims),
                compute_dtype=compute_dtype)
    return w_stacks, b_stack, meta


def _choose_batch_tile(B):
    """Batch tile: as big as possible, multiple of 16, with <=15% padding waste."""
    base = _round_up(max(B, 1), BATCH_ALIGN)
    if base <= 512:
        return base, base
    for tb in (512, 256, 128, 64, 32, 16):
        bp = _round_up(B, tb)
        if bp <= 1.15 * base:
            return tb, bp
    return 16, base


# ---------------------------------------------------------------------------
# Forward pass.
# ---------------------------------------------------------------------------
def hierarchical_autoencoder_forward(x, fused, clusters):
    """Equivalent to HierarchicalAutoEncoder.forward using a single fused Pallas kernel."""
    w_stacks, b_stack, meta = fused
    acts = meta["acts"]
    in_dims = meta["in_dims"]
    out_dims = meta["out_dims"]
    compute_dtype = meta["compute_dtype"]

    orig_shape = x.shape
    xf = x.reshape(-1, orig_shape[-1]).astype(jnp.float32)
    B, F = xf.shape
    C = len(clusters)
    L = len(acts)
    nc_pad = in_dims[0]
    out_pad = out_dims[-1]

    # --- one gather: (B, F) -> (C, B, nc_pad).  Padded columns may hold garbage;
    #     the corresponding weight columns are zero so they contribute nothing.
    gidx = np.zeros((C, nc_pad), np.int32)
    for c, cl in enumerate(clusters):
        gidx[c, :len(cl)] = np.asarray(cl, np.int32)
    xg = jnp.take(xf, jnp.asarray(gidx.reshape(-1)), axis=1)
    xg = xg.reshape(B, C, nc_pad).transpose(1, 0, 2)                 # (C, B, nc_pad)

    tb, b_pad = _choose_batch_tile(B)
    xg = jnp.pad(xg, ((0, 0), (0, b_pad - B), (0, 0))).astype(compute_dtype)
    nb = b_pad // tb

    kernel = functools.partial(_fused_hae_kernel, acts=acts, out_dims=out_dims,
                               compute_dtype=compute_dtype)

    # Cluster is the OUTER grid axis: weights revisit the same block across the inner
    # batch tiles, so Pallas keeps them resident in VMEM for the whole cluster.
    in_specs = [pl.BlockSpec((1, tb, nc_pad), lambda c, i: (c, i, 0))]
    args = [xg]
    for l in range(L):
        in_specs.append(pl.BlockSpec((1, in_dims[l], out_dims[l]),
                                     lambda c, i: (c, 0, 0)))
        args.append(w_stacks[l])
    in_specs.append(pl.BlockSpec((1, L, b_stack.shape[2]), lambda c, i: (c, 0, 0)))
    args.append(b_stack)

    flops = 2 * C * b_pad * sum(in_dims[l] * out_dims[l] for l in range(L))
    trans = C * b_pad * sum(out_dims[l] for l in range(L) if acts[l] in ("elu", "sigmoid"))
    bytes_acc = (xg.size * xg.dtype.itemsize
                 + C * b_pad * out_pad * 4
                 + sum(int(w.size) * w.dtype.itemsize for w in w_stacks)
                 + int(b_stack.size) * 4)

    out = pl.pallas_call(
        kernel,
        out_shape=jax.ShapeDtypeStruct((C, b_pad, out_pad), jnp.float32),
        grid=(C, nb),
        in_specs=in_specs,
        out_specs=pl.BlockSpec((1, tb, out_pad), lambda c, i: (c, i, 0)),
        compiler_params=pltpu.CompilerParams(
            dimension_semantics=("parallel", "parallel"),
        ),
        cost_estimate=pl.CostEstimate(flops=int(flops), transcendentals=int(trans),
                                      bytes_accessed=int(bytes_acc)),
    )(*args)

    # --- one gather back: scatter cluster predictions into feature slots.
    #     Extra zero column handles features not covered by any cluster; later
    #     clusters override earlier ones (matches torch's sequential assignment).
    pred = out[:, :B, :]                                             # (C, B, out_pad)
    flat = pred.transpose(1, 0, 2).reshape(B, C * out_pad)
    flat = jnp.concatenate([flat, jnp.zeros((B, 1), flat.dtype)], axis=1)
    src = np.full((F,), C * out_pad, np.int32)
    for c, cl in enumerate(clusters):
        for j, f in enumerate(cl):
            src[f] = c * out_pad + j
    outf = jnp.take(flat, jnp.asarray(src), axis=1)                  # (B, F)
    return outf.reshape(orig_shape).astype(x.dtype)


# ---------------------------------------------------------------------------
# Init mirroring nn.Linear defaults (PyTorch [out, in] weight convention).
# ---------------------------------------------------------------------------
def init_hierarchical_autoencoder(key, n_features, clusters, hidden_features=64,
                                  num_encoder_layers=4, num_decoder_layers=4,
                                  nonlinearity="ReLU"):
    if num_encoder_layers < 1:
        raise ValueError("Invalid number of encoder layers")
    if num_decoder_layers < 1:
        raise ValueError("Invalid number of decoder layers")
    nl = {"ReLU": "relu", "ELU": "elu"}[nonlinearity]

    params = []
    for cluster in clusters:
        n_c = len(cluster)
        if n_c < 0 or n_c >= n_features:
            raise ValueError("Invalid cluster")
        latent = math.ceil(n_c / 2)
        dims = ([n_c] + [hidden_features] * (num_encoder_layers + 1) + [latent]
                + [hidden_features] * (num_decoder_layers + 1) + [n_c])
        layers = []
        for i in range(len(dims) - 1):
            fin, fout = dims[i], dims[i + 1]
            key, kw, kb = jax.random.split(key, 3)
            stdv = 1.0 / math.sqrt(fin)
            W = jax.random.uniform(kw, (fout, fin), jnp.float32, -stdv, stdv)
            b = jax.random.uniform(kb, (fout,), jnp.float32, -stdv, stdv)
            layers.append((W, b))
        acts = tuple([nl] * (num_encoder_layers + 1) + ["none"]
                     + [nl] * (num_decoder_layers + 1) + ["sigmoid"])
        params.append((layers, acts))
    return params


# ---------------------------------------------------------------------------
# Pure-JAX references for validation.
# ---------------------------------------------------------------------------
def _reference_forward(x, params, clusters):
    """Full-f32 reference (matches the PyTorch module)."""
    orig_shape = x.shape
    xf = x.reshape(-1, orig_shape[-1]).astype(jnp.float32)
    out = jnp.zeros_like(xf)
    for (layers, acts), cluster in zip(params, clusters):
        idx = jnp.asarray(cluster, dtype=jnp.int32)
        h = jnp.take(xf, idx, axis=1)
        for (W, b), a in zip(layers, acts):
            h = h @ W.T + b
            h = _apply_act(h, a)
        out = out.at[:, idx].set(h)
    return out.reshape(orig_shape)


def _reference_forward_lowp(x, params, clusters, compute_dtype=jnp.bfloat16):
    """Reference that mirrors the kernel's bf16 matmul / f32 accumulate math."""
    orig_shape = x.shape
    xf = x.reshape(-1, orig_shape[-1]).astype(jnp.float32)
    out = jnp.zeros_like(xf)
    for (layers, acts), cluster in zip(params, clusters):
        idx = jnp.asarray(cluster, dtype=jnp.int32)
        h = jnp.take(xf, idx, axis=1).astype(compute_dtype)
        L = len(layers)
        for li, ((W, b), a) in enumerate(zip(layers, acts)):
            acc = jnp.dot(h, W.astype(compute_dtype).T,
                          preferred_element_type=jnp.float32) + b.astype(jnp.float32)
            acc = _apply_act(acc, a)
            if li + 1 < L:
                h = acc.astype(compute_dtype)
            else:
                h = acc
        out = out.at[:, idx].set(h)
    return out.reshape(orig_shape)


if __name__ == "__main__":
    n_features = 7
    clusters = [[0, 1, 2], [3, 4, 5, 6]]
    hidden_features = 32
    num_encoder_layers = 2
    num_decoder_layers = 2
    batch = 8

    key = jax.random.PRNGKey(0)
    key, kx = jax.random.split(key)
    x = jax.random.normal(kx, (batch, n_features), jnp.float32)

    params = init_hierarchical_autoencoder(
        key, n_features, clusters, hidden_features,
        num_encoder_layers, num_decoder_layers, nonlinearity="ReLU")
    fused = prepare_fused_params(params, clusters, compute_dtype=jnp.bfloat16)

    out = hierarchical_autoencoder_forward(x, fused, clusters)
    out = jax.block_until_ready(out)

    ref_lp = _reference_forward_lowp(x, params, clusters, jnp.bfloat16)
    ref_fp = _reference_forward(x, params, clusters)
    assert out.shape == x.shape
    err_lp = float(jnp.max(jnp.abs(out - ref_lp)))
    err_fp = float(jnp.max(jnp.abs(out - ref_fp)))
    assert err_lp < 5e-3, f"mismatch vs bf16 reference: {err_lp}"
    assert err_fp < 5e-2, f"mismatch vs f32 reference: {err_fp}"

    print("KERNEL_OK")
</pallas_src>

<mosaic_0001>
module attributes {stable_mosaic.version = 11 : i64} {
  func.func @_fused_hae_kernel(%arg0: i32, %arg1: i32, %arg2: memref<1x16x16xbf16, #tpu.memory_space<vmem>>, %arg3: memref<1x16x32xbf16, #tpu.memory_space<vmem>>, %arg4: memref<1x32x32xbf16, #tpu.memory_space<vmem>>, %arg5: memref<1x32x32xbf16, #tpu.memory_space<vmem>>, %arg6: memref<1x32x16xbf16, #tpu.memory_space<vmem>>, %arg7: memref<1x16x32xbf16, #tpu.memory_space<vmem>>, %arg8: memref<1x32x32xbf16, #tpu.memory_space<vmem>>, %arg9: memref<1x32x32xbf16, #tpu.memory_space<vmem>>, %arg10: memref<1x32x16xbf16, #tpu.memory_space<vmem>>, %arg11: memref<1x8x32xf32, #tpu.memory_space<vmem>>, %arg12: memref<1x16x16xf32, #tpu.memory_space<vmem>>) attributes {dimension_semantics = [#tpu.dimension_semantics<parallel>, #tpu.dimension_semantics<parallel>], iteration_bounds = array<i64: 2, 1>, scalar_prefetch = 0 : i64, scratch_operands = 0 : i64, tpu.core_type = #tpu.core_type<tc>, window_params = [{transform_indices = @transform_0, window_bounds = array<i64: 1, 16, 16>}, {transform_indices = @transform_1, window_bounds = array<i64: 1, 16, 32>}, {transform_indices = @transform_2, window_bounds = array<i64: 1, 32, 32>}, {transform_indices = @transform_3, window_bounds = array<i64: 1, 32, 32>}, {transform_indices = @transform_4, window_bounds = array<i64: 1, 32, 16>}, {transform_indices = @transform_5, window_bounds = array<i64: 1, 16, 32>}, {transform_indices = @transform_6, window_bounds = array<i64: 1, 32, 32>}, {transform_indices = @transform_7, window_bounds = array<i64: 1, 32, 32>}, {transform_indices = @transform_8, window_bounds = array<i64: 1, 32, 16>}, {transform_indices = @transform_9, window_bounds = array<i64: 1, 8, 32>}, {transform_indices = @transform_10, window_bounds = array<i64: 1, 16, 16>}]} {
    %c0 = arith.constant 0 : index
    %c0_0 = arith.constant 0 : index
    %c0_1 = arith.constant 0 : index
    %0 = vector.load %arg11[%c0, %c0_0, %c0_1] : memref<1x8x32xf32, #tpu.memory_space<vmem>>, vector<1x8x32xf32>
    %1 = vector.shape_cast %0 : vector<1x8x32xf32> to vector<8x32xf32>
    %c0_2 = arith.constant 0 : index
    %c0_3 = arith.constant 0 : index
    %c0_4 = arith.constant 0 : index
    %2 = vector.load %arg2[%c0_2, %c0_3, %c0_4] : memref<1x16x16xbf16, #tpu.memory_space<vmem>>, vector<1x16x16xbf16>
    %3 = vector.shape_cast %2 : vector<1x16x16xbf16> to vector<16x16xbf16>
    %c0_5 = arith.constant 0 : index
    %c0_6 = arith.constant 0 : index
    %c0_7 = arith.constant 0 : index
    %4 = vector.load %arg3[%c0_5, %c0_6, %c0_7] : memref<1x16x32xbf16, #tpu.memory_space<vmem>>, vector<1x16x32xbf16>
    %5 = vector.shape_cast %4 : vector<1x16x32xbf16> to vector<16x32xbf16>
    %cst = arith.constant dense<0.000000e+00> : vector<16x32xf32>
    %6 = tpu.matmul %3, %5, %cst {dimension_numbers = #tpu.dot_dimension_numbers<[1], [0], [0], [1], [0, 0, 1, 1], [], []>} : vector<16x16xbf16>, vector<16x32xbf16>, vector<16x32xf32> -> vector<16x32xf32>
    %7 = vector.extract_strided_slice %1 {offsets = [0, 0], sizes = [1, 32], strides = [1, 1]} : vector<8x32xf32> to vector<1x32xf32>
    %8 = vector.broadcast %7 : vector<1x32xf32> to vector<16x32xf32>
    %9 = arith.addf %6, %8 : vector<16x32xf32>
    %cst_8 = arith.constant 0.000000e+00 : f32
    %10 = vector.broadcast %cst_8 : f32 to vector<16x32xf32>
    %11 = arith.maximumf %9, %10 : vector<16x32xf32>
    %12 = arith.truncf %11 : vector<16x32xf32> to vector<16x32xbf16>
    %c0_9 = arith.constant 0 : index
    %c0_10 = arith.constant 0 : index
    %c0_11 = arith.constant 0 : index
    %13 = vector.load %arg4[%c0_9, %c0_10, %c0_11] : memref<1x32x32xbf16, #tpu.memory_space<vmem>>, vector<1x32x32xbf16>
    %14 = vector.shape_cast %13 : vector<1x32x32xbf16> to vector<32x32xbf16>
    %cst_12 = arith.constant dense<0.000000e+00> : vector<16x32xf32>
    %15 = tpu.matmul %12, %14, %cst_12 {dimension_numbers = #tpu.dot_dimension_numbers<[1], [0], [0], [1], [0, 0, 1, 1], [], []>} : vector<16x32xbf16>, vector<32x32xbf16>, vector<16x32xf32> -> vector<16x32xf32>
    %16 = vector.extract_strided_slice %1 {offsets = [1, 0], sizes = [1, 32], strides = [1, 1]} : vector<8x32xf32> to vector<1x32xf32>
    %17 = vector.broadcast %16 : vector<1x32xf32> to vector<16x32xf32>
    %18 = arith.addf %15, %17 : vector<16x32xf32>
    %cst_13 = arith.constant 0.000000e+00 : f32
    %19 = vector.broadcast %cst_13 : f32 to vector<16x32xf32>
    %20 = arith.maximumf %18, %19 : vector<16x32xf32>
    %21 = arith.truncf %20 : vector<16x32xf32> to vector<16x32xbf16>
    %c0_14 = arith.constant 0 : index
    %c0_15 = arith.constant 0 : index
    %c0_16 = arith.constant 0 : index
    %22 = vector.load %arg5[%c0_14, %c0_15, %c0_16] : memref<1x32x32xbf16, #tpu.memory_space<vmem>>, vector<1x32x32xbf16>
    %23 = vector.shape_cast %22 : vector<1x32x32xbf16> to vector<32x32xbf16>
    %cst_17 = arith.constant dense<0.000000e+00> : vector<16x32xf32>
    %24 = tpu.matmul %21, %23, %cst_17 {dimension_numbers = #tpu.dot_dimension_numbers<[1], [0], [0], [1], [0, 0, 1, 1], [], []>} : vector<16x32xbf16>, vector<32x32xbf16>, vector<16x32xf32> -> vector<16x32xf32>
    %25 = vector.extract_strided_slice %1 {offsets = [2, 0], sizes = [1, 32], strides = [1, 1]} : vector<8x32xf32> to vector<1x32xf32>
    %26 = vector.broadcast %25 : vector<1x32xf32> to vector<16x32xf32>
    %27 = arith.addf %24, %26 : vector<16x32xf32>
    %cst_18 = arith.constant 0.000000e+00 : f32
    %28 = vector.broadcast %cst_18 : f32 to vector<16x32xf32>
    %29 = arith.maximumf %27, %28 : vector<16x32xf32>
    %30 = arith.truncf %29 : vector<16x32xf32> to vector<16x32xbf16>
    %c0_19 = arith.constant 0 : index
    %c0_20 = arith.constant 0 : index
    %c0_21 = arith.constant 0 : index
    %31 = vector.load %arg6[%c0_19, %c0_20, %c0_21] : memref<1x32x16xbf16, #tpu.memory_space<vmem>>, vector<1x32x16xbf16>
    %32 = vector.shape_cast %31 : vector<1x32x16xbf16> to vector<32x16xbf16>
    %cst_22 = arith.constant dense<0.000000e+00> : vector<16x16xf32>
    %33 = tpu.matmul %30, %32, %cst_22 {dimension_numbers = #tpu.dot_dimension_numbers<[1], [0], [0], [1], [0, 0, 1, 1], [], []>} : vector<16x32xbf16>, vector<32x16xbf16>, vector<16x16xf32> -> vector<16x16xf32>
    %34 = vector.extract_strided_slice %1 {offsets = [3, 0], sizes = [1, 16], strides = [1, 1]} : vector<8x32xf32> to vector<1x16xf32>
    %35 = vector.broadcast %34 : vector<1x16xf32> to vector<16x16xf32>
    %36 = arith.addf %33, %35 : vector<16x16xf32>
    %37 = arith.truncf %36 : vector<16x16xf32> to vector<16x16xbf16>
    %c0_23 = arith.constant 0 : index
    %c0_24 = arith.constant 0 : index
    %c0_25 = arith.constant 0 : index
    %38 = vector.load %arg7[%c0_23, %c0_24, %c0_25] : memref<1x16x32xbf16, #tpu.memory_space<vmem>>, vector<1x16x32xbf16>
    %39 = vector.shape_cast %38 : vector<1x16x32xbf16> to vector<16x32xbf16>
    %cst_26 = arith.constant dense<0.000000e+00> : vector<16x32xf32>
    %40 = tpu.matmul %37, %39, %cst_26 {dimension_numbers = #tpu.dot_dimension_numbers<[1], [0], [0], [1], [0, 0, 1, 1], [], []>} : vector<16x16xbf16>, vector<16x32xbf16>, vector<16x32xf32> -> vector<16x32xf32>
    %41 = vector.extract_strided_slice %1 {offsets = [4, 0], sizes = [1, 32], strides = [1, 1]} : vector<8x32xf32> to vector<1x32xf32>
    %42 = vector.broadcast %41 : vector<1x32xf32> to vector<16x32xf32>
    %43 = arith.addf %40, %42 : vector<16x32xf32>
    %cst_27 = arith.constant 0.000000e+00 : f32
    %44 = vector.broadcast %cst_27 : f32 to vector<16x32xf32>
    %45 = arith.maximumf %43, %44 : vector<16x32xf32>
    %46 = arith.truncf %45 : vector<16x32xf32> to vector<16x32xbf16>
    %c0_28 = arith.constant 0 : index
    %c0_29 = arith.constant 0 : index
    %c0_30 = arith.constant 0 : index
    %47 = vector.load %arg8[%c0_28, %c0_29, %c0_30] : memref<1x32x32xbf16, #tpu.memory_space<vmem>>, vector<1x32x32xbf16>
    %48 = vector.shape_cast %47 : vector<1x32x32xbf16> to vector<32x32xbf16>
    %cst_31 = arith.constant dense<0.000000e+00> : vector<16x32xf32>
    %49 = tpu.matmul %46, %48, %cst_31 {dimension_numbers = #tpu.dot_dimension_numbers<[1], [0], [0], [1], [0, 0, 1, 1], [], []>} : vector<16x32xbf16>, vector<32x32xbf16>, vector<16x32xf32> -> vector<16x32xf32>
    %50 = vector.extract_strided_slice %1 {offsets = [5, 0], sizes = [1, 32], strides = [1, 1]} : vector<8x32xf32> to vector<1x32xf32>
    %51 = vector.broadcast %50 : vector<1x32xf32> to vector<16x32xf32>
    %52 = arith.addf %49, %51 : vector<16x32xf32>
    %cst_32 = arith.constant 0.000000e+00 : f32
    %53 = vector.broadcast %cst_32 : f32 to vector<16x32xf32>
    %54 = arith.maximumf %52, %53 : vector<16x32xf32>
    %55 = arith.truncf %54 : vector<16x32xf32> to vector<16x32xbf16>
    %c0_33 = arith.constant 0 : index
    %c0_34 = arith.constant 0 : index
    %c0_35 = arith.constant 0 : index
    %56 = vector.load %arg9[%c0_33, %c0_34, %c0_35] : memref<1x32x32xbf16, #tpu.memory_space<vmem>>, vector<1x32x32xbf16>
    %57 = vector.shape_cast %56 : vector<1x32x32xbf16> to vector<32x32xbf16>
    %cst_36 = arith.constant dense<0.000000e+00> : vector<16x32xf32>
    %58 = tpu.matmul %55, %57, %cst_36 {dimension_numbers = #tpu.dot_dimension_numbers<[1], [0], [0], [1], [0, 0, 1, 1], [], []>} : vector<16x32xbf16>, vector<32x32xbf16>, vector<16x32xf32> -> vector<16x32xf32>
    %59 = vector.extract_strided_slice %1 {offsets = [6, 0], sizes = [1, 32], strides = [1, 1]} : vector<8x32xf32> to vector<1x32xf32>
    %60 = vector.broadcast %59 : vector<1x32xf32> to vector<16x32xf32>
    %61 = arith.addf %58, %60 : vector<16x32xf32>
    %cst_37 = arith.constant 0.000000e+00 : f32
    %62 = vector.broadcast %cst_37 : f32 to vector<16x32xf32>
    %63 = arith.maximumf %61, %62 : vector<16x32xf32>
    %64 = arith.truncf %63 : vector<16x32xf32> to vector<16x32xbf16>
    %c0_38 = arith.constant 0 : index
    %c0_39 = arith.constant 0 : index
    %c0_40 = arith.constant 0 : index
    %65 = vector.load %arg10[%c0_38, %c0_39, %c0_40] : memref<1x32x16xbf16, #tpu.memory_space<vmem>>, vector<1x32x16xbf16>
    %66 = vector.shape_cast %65 : vector<1x32x16xbf16> to vector<32x16xbf16>
    %cst_41 = arith.constant dense<0.000000e+00> : vector<16x16xf32>
    %67 = tpu.matmul %64, %66, %cst_41 {dimension_numbers = #tpu.dot_dimension_numbers<[1], [0], [0], [1], [0, 0, 1, 1], [], []>} : vector<16x32xbf16>, vector<32x16xbf16>, vector<16x16xf32> -> vector<16x16xf32>
    %68 = vector.extract_strided_slice %1 {offsets = [7, 0], sizes = [1, 16], strides = [1, 1]} : vector<8x32xf32> to vector<1x16xf32>
    %69 = vector.broadcast %68 : vector<1x16xf32> to vector<16x16xf32>
    %70 = arith.addf %67, %69 : vector<16x16xf32>
    %71 = arith.negf %70 : vector<16x16xf32>
    %72 = math.exp %71 : vector<16x16xf32>
    %cst_42 = arith.constant 1.000000e+00 : f32
    %73 = vector.broadcast %cst_42 : f32 to vector<16x16xf32>
    %74 = arith.addf %73, %72 : vector<16x16xf32>
    %75 = arith.divf %73, %74 : vector<16x16xf32>
    %c0_43 = arith.constant 0 : index
    %c0_44 = arith.constant 0 : index
    %c0_45 = arith.constant 0 : index
    %76 = vector.load %arg12[%c0_43, %c0_44, %c0_45] : memref<1x16x16xf32, #tpu.memory_space<vmem>>, vector<1x16x16xf32>
    %77 = vector.shape_cast %76 : vector<1x16x16xf32> to vector<16x16xf32>
    %78 = vector.shape_cast %75 : vector<16x16xf32> to vector<1x16x16xf32>
    tpu.vector_store %arg12[%c0_43, %c0_44, %c0_45], %78 {strides = array<i32>} : memref<1x16x16xf32, #tpu.memory_space<vmem>>, vector<1x16x16xf32>,
    return
  }
  func.func @transform_0(%arg0: i32, %arg1: i32) -> (i32, i32, i32) {
    %c0_i32 = arith.constant 0 : i32
    %c0_i32_0 = arith.constant 0 : i32
    return %arg0, %arg1, %c0_i32 : i32, i32, i32
  }
  func.func @transform_1(%arg0: i32, %arg1: i32) -> (i32, i32, i32) {
    %c0_i32 = arith.constant 0 : i32
    %c0_i32_0 = arith.constant 0 : i32
    %c0_i32_1 = arith.constant 0 : i32
    return %arg0, %c0_i32, %c0_i32_0 : i32, i32, i32
  }
  func.func @transform_2(%arg0: i32, %arg1: i32) -> (i32, i32, i32) {
    %c0_i32 = arith.constant 0 : i32
    %c0_i32_0 = arith.constant 0 : i32
    %c0_i32_1 = arith.constant 0 : i32
    return %arg0, %c0_i32, %c0_i32_0 : i32, i32, i32
  }
  func.func @transform_3(%arg0: i32, %arg1: i32) -> (i32, i32, i32) {
    %c0_i32 = arith.constant 0 : i32
    %c0_i32_0 = arith.constant 0 : i32
    %c0_i32_1 = arith.constant 0 : i32
    return %arg0, %c0_i32, %c0_i32_0 : i32, i32, i32
  }
  func.func @transform_4(%arg0: i32, %arg1: i32) -> (i32, i32, i32) {
    %c0_i32 = arith.constant 0 : i32
    %c0_i32_0 = arith.constant 0 : i32
    %c0_i32_1 = arith.constant 0 : i32
    return %arg0, %c0_i32, %c0_i32_0 : i32, i32, i32
  }
  func.func @transform_5(%arg0: i32, %arg1: i32) -> (i32, i32, i32) {
    %c0_i32 = arith.constant 0 : i32
    %c0_i32_0 = arith.constant 0 : i32
    %c0_i32_1 = arith.constant 0 : i32
    return %arg0, %c0_i32, %c0_i32_0 : i32, i32, i32
  }
  func.func @transform_6(%arg0: i32, %arg1: i32) -> (i32, i32, i32) {
    %c0_i32 = arith.constant 0 : i32
    %c0_i32_0 = arith.constant 0 : i32
    %c0_i32_1 = arith.constant 0 : i32
    return %arg0, %c0_i32, %c0_i32_0 : i32, i32, i32
  }
  func.func @transform_7(%arg0: i32, %arg1: i32) -> (i32, i32, i32) {
    %c0_i32 = arith.constant 0 : i32
    %c0_i32_0 = arith.constant 0 : i32
    %c0_i32_1 = arith.constant 0 : i32
    return %arg0, %c0_i32, %c0_i32_0 : i32, i32, i32
  }
  func.func @transform_8(%arg0: i32, %arg1: i32) -> (i32, i32, i32) {
    %c0_i32 = arith.constant 0 : i32
    %c0_i32_0 = arith.constant 0 : i32
    %c0_i32_1 = arith.constant 0 : i32
    return %arg0, %c0_i32, %c0_i32_0 : i32, i32, i32
  }
  func.func @transform_9(%arg0: i32, %arg1: i32) -> (i32, i32, i32) {
    %c0_i32 = arith.constant 0 : i32
    %c0_i32_0 = arith.constant 0 : i32
    %c0_i32_1 = arith.constant 0 : i32
    return %arg0, %c0_i32, %c0_i32_0 : i32, i32, i32
  }
  func.func @transform_10(%arg0: i32, %arg1: i32) -> (i32, i32, i32) {
    %c0_i32 = arith.constant 0 : i32
    %c0_i32_0 = arith.constant 0 : i32
    return %arg0, %arg1, %c0_i32 : i32, i32, i32
  }
}

</mosaic_0001>

<llo_original>
// kernel: tpu_custom_call.1
$region0: #{tpu_custom_call.1}
  #allocation0 [shape = 'u32[]', space=smem, size = 0x4, offset = 0x4, fixed_abs, tag = 'smem constant byte address 0x4 - core index']
  #allocation1 [shape = 'u32[72,128]{1,0:T(1,128)}', space=vmem, size = 0x9000, scoped, tag = 'internal scratch']
  %s0 = inlined_call_operand.hbm [shape: bf16[2,16,16], index: 0, kind: input, shape index: {}]
  %s1 = inlined_call_operand.hbm [shape: bf16[2,16,32], index: 1, kind: input, shape index: {}]
  %s2 = inlined_call_operand.vmem [shape: bf16[2,32,32], index: 2, kind: input, shape index: {}]
  %s3 = inlined_call_operand.vmem [shape: bf16[2,32,32], index: 3, kind: input, shape index: {}]
  %s4 = inlined_call_operand.vmem [shape: bf16[2,32,16], index: 4, kind: input, shape index: {}]
  %s5 = inlined_call_operand.hbm [shape: bf16[2,16,32], index: 5, kind: input, shape index: {}]
  %s6 = inlined_call_operand.vmem [shape: bf16[2,32,32], index: 6, kind: input, shape index: {}]
  %s7 = inlined_call_operand.hbm [shape: bf16[2,32,32], index: 7, kind: input, shape index: {}]
  %s8 = inlined_call_operand.vmem [shape: bf16[2,32,16], index: 8, kind: input, shape index: {}]
  %s9 = inlined_call_operand.hbm [shape: f32[2,8,32], index: 9, kind: input, shape index: {}]
  %s10 = inlined_call_operand.hbm [shape: f32[2,16,16], index: 10, kind: output, shape index: {}]
  %s11 = sld [smem:[#allocation0]]
  $region93: #{tpu_custom_call.1} parent=0
    _
  %s13 = ssub.s32 1, %s11
  %s14 = scalar_select 0, %s13, %s11
  $region1: #{tpu_custom_call.1} parent=0
    #allocation2 [shape = 'u8[8192]{0}', space=vmem, size = 0x2000, scoped, tag = 'input window, operand 0']
    #allocation3 [shape = 's32[2]{0}', space=sflag, size = 0x8, scoped, tag = 'scoped memory for tpu_custom_call.1']
    #allocation4 [shape = 's32[2]{0}', space=sflag, size = 0x8, scoped, tag = 'scoped memory for tpu_custom_call.1']
    #allocation5 [shape = 'u8[8192]{0}', space=vmem, size = 0x2000, scoped, tag = 'input window, operand 1']
    #allocation6 [shape = 's32[2]{0}', space=sflag, size = 0x8, scoped, tag = 'scoped memory for tpu_custom_call.1']
    #allocation7 [shape = 'u8[8192]{0}', space=vmem, size = 0x2000, scoped, tag = 'input window, operand 5']
    #allocation8 [shape = 'u8[16384]{0}', space=vmem, size = 0x4000, scoped, tag = 'input window, operand 7']
    #allocation9 [shape = 's32[2]{0}', space=sflag, size = 0x8, scoped, tag = 'scoped memory for tpu_custom_call.1']
    #allocation10 [shape = 'u8[8192]{0}', space=vmem, size = 0x2000, scoped, tag = 'input window, operand 9']
    #allocation11 [shape = 'u8[16384]{0}', space=vmem, size = 0x4000, scoped, tag = 'output window, operand 0']
    %15 = vsyncpa [#allocation3], 0
    %s16 = scalar_lea.sflag [#allocation3], 1
    %17 = vsyncpa %s16, 0
    %18 = vsyncpa [#allocation6], 0
    %s19 = scalar_lea.sflag [#allocation6], 1
    %20 = vsyncpa %s19, 0
    %21 = vsyncpa [#allocation9], 0
    %s22 = scalar_lea.sflag [#allocation9], 1
    %23 = vsyncpa %s22, 0
    %24 = vsyncpa [#allocation4], 0
    %s25 = scalar_lea.sflag [#allocation4], 1
    %26 = vsyncpa %s25, 0
    loop: start=0, step=1, limit=4
    $region2: #{tpu_custom_call.1} parent=1 // loop_pre_header
      _
    $region3: #{tpu_custom_call.1} parent=1 // loop_header
      %s28 = sphi 0, %s32
      %p29 = scmp.ge.s32.totalorder %s28, 4
      %s35 = sphi 0, %s47
      %s36 = sphi 0, %s43
      %s37 = sphi 0, %s35
      %s38 = sphi 0, %s36
      %s39 = sphi 0, %s37
      %s40 = sphi 0, %s38
      %s52 = sphi 0, %s54
      %s55 = sphi 0, %s52
      %s56 = sphi 0, %s55
      %s72 = sphi 0, %s56
      %s78 = sphi 0, %s80
      %s81 = sphi 0, %s78
      %s82 = sphi 0, %s81
      %s98 = sphi 0, %s82
      %s104 = sphi 0, %s106
      %s107 = sphi 0, %s104
      %s108 = sphi 0, %s107
      %s124 = sphi 0, %s108
      %s130 = sphi 0, %s132
      %s133 = sphi 0, %s130
      %s134 = sphi 0, %s133
      %s150 = sphi 0, %s134
      %s156 = sphi 0, %s158
      %s159 = sphi 0, %s156
      %s160 = sphi 0, %s159
      %s176 = sphi 0, %s160
      %s182 = sphi 0, %s184
      %s185 = sphi 0, %s182
      %s186 = sphi 0, %s185
      %s202 = sphi 0, %s186
      %s208 = sphi 0, %s210
      %s211 = sphi 0, %s208
      %s212 = sphi 0, %s211
      %s228 = sphi 0, %s212
      %s234 = sphi 0, %s236
      %s237 = sphi 0, %s234
      %s238 = sphi 0, %s237
      %s254 = sphi 0, %s238
      %s260 = sphi 0, %s262
      %s263 = sphi 0, %s260
      %s264 = sphi 0, %s263
      %s280 = sphi 0, %s264
      %s286 = sphi 0, %s288
      %s289 = sphi 0, %s286
      %s290 = sphi 0, %s289
      %s306 = sphi 0, %s290
      %s314 = sphi 0, %s316
      %s317 = sphi 0, %s314
      %s318 = sphi 0, %s317
      %s334 = sphi 0, %s318
    $region4: #{tpu_custom_call.1} parent=1 // loop_header_branch
      %31 = sbr.rel (%p29) target = $region8
    $region5: #{tpu_custom_call.1} parent=1 // loop_body
      %s33 = ssub.s32 %s28, 1
      %s34 = ssub.s32 %s28, 2
      %s41 = sadd.s32 1, %s36
      %p42 = scmp.ge.s32.totalorder %s41, 1
      %s43 = scalar_select %p42, 0, %s41
      %s44 = sadd.s32 1, %s35
      %s45 = scalar_select %p42, %s44, %s35
      %p46 = scmp.ge.s32.totalorder %s45, 2
      %s47 = scalar_select %p46, 0, %s45
      %s48 = ssub.s32 %s35, %s47
      %s49 = ssub.s32 %s36, %s43
      %s50 = sor.u32 %s48, %s49
      %p51 = scmp.eq.s32.totalorder %s50, 0
      %s53 = sadd.s32 %s52, 1
      %s54 = scalar_select %p51, %s52, %s53
      %p57 = pneg %p51
      %p58 = scmp.eq.s32.totalorder %s28, 1
      %p59 = por %p57, %p58
      %p60 = scmp.ne.s32.totalorder %s52, %s55
      %p61 = scmp.eq.s32.totalorder %s28, 0
      %p62 = por %p60, %p61
      %p63 = scmp.ne.s32.totalorder %s52, %s55
      %p64 = scmp.eq.s32.totalorder %s33, 1
      %p65 = por %p63, %p64
      %p66 = scmp.ne.s32.totalorder %s55, %s56
      %p67 = scmp.eq.s32.totalorder %s33, 0
      %p68 = por %p66, %p67
      %p69 = scmp.ne.s32.totalorder %s55, %s56
      %p70 = scmp.eq.s32.totalorder %s34, 1
      %p71 = por %p69, %p70
      %p73 = scmp.ne.s32.totalorder %s56, %s72
      %p74 = scmp.eq.s32.totalorder %s34, 0
      %p75 = por %p73, %p74
      %s76 = ssub.s32 %s35, %s47
      %p77 = scmp.eq.s32.totalorder %s76, 0
      %s79 = sadd.s32 %s78, 1
      %s80 = scalar_select %p77, %s78, %s79
      %p83 = pneg %p77
      %p84 = scmp.eq.s32.totalorder %s28, 1
      %p85 = por %p83, %p84
      %p86 = scmp.ne.s32.totalorder %s78, %s81
      %p87 = scmp.eq.s32.totalorder %s28, 0
      %p88 = por %p86, %p87
      %p89 = scmp.ne.s32.totalorder %s78, %s81
      %p90 = scmp.eq.s32.totalorder %s33, 1
      %p91 = por %p89, %p90
      %p92 = scmp.ne.s32.totalorder %s81, %s82
      %p93 = scmp.eq.s32.totalorder %s33, 0
      %p94 = por %p92, %p93
      %p95 = scmp.ne.s32.totalorder %s81, %s82
      %p96 = scmp.eq.s32.totalorder %s34, 1
      %p97 = por %p95, %p96
      %p99 = scmp.ne.s32.totalorder %s82, %s98
      %p100 = scmp.eq.s32.totalorder %s34, 0
      %p101 = por %p99, %p100
      %s102 = ssub.s32 %s35, %s47
      %p103 = scmp.eq.s32.totalorder %s102, 0
      %s105 = sadd.s32 %s104, 1
      %s106 = scalar_select %p103, %s104, %s105
      %p109 = pneg %p103
      %p110 = scmp.eq.s32.totalorder %s28, 1
      %p111 = por %p109, %p110
      %p112 = scmp.ne.s32.totalorder %s104, %s107
      %p113 = scmp.eq.s32.totalorder %s28, 0
      %p114 = por %p112, %p113
      %p115 = scmp.ne.s32.totalorder %s104, %s107
      %p116 = scmp.eq.s32.totalorder %s33, 1
      %p117 = por %p115, %p116
      %p118 = scmp.ne.s32.totalorder %s107, %s108
      %p119 = scmp.eq.s32.totalorder %s33, 0
      %p120 = por %p118, %p119
      %p121 = scmp.ne.s32.totalorder %s107, %s108
      %p122 = scmp.eq.s32.totalorder %s34, 1
      %p123 = por %p121, %p122
      %p125 = scmp.ne.s32.totalorder %s108, %s124
      %p126 = scmp.eq.s32.totalorder %s34, 0
      %p127 = por %p125, %p126
      %s128 = ssub.s32 %s35, %s47
      %p129 = scmp.eq.s32.totalorder %s128, 0
      %s131 = sadd.s32 %s130, 1
      %s132 = scalar_select %p129, %s130, %s131
      %p135 = pneg %p129
      %p136 = scmp.eq.s32.totalorder %s28, 1
      %p137 = por %p135, %p136
      %p138 = scmp.ne.s32.totalorder %s130, %s133
      %p139 = scmp.eq.s32.totalorder %s28, 0
      %p140 = por %p138, %p139
      %p141 = scmp.ne.s32.totalorder %s130, %s133
      %p142 = scmp.eq.s32.totalorder %s33, 1
      %p143 = por %p141, %p142
      %p144 = scmp.ne.s32.totalorder %s133, %s134
      %p145 = scmp.eq.s32.totalorder %s33, 0
      %p146 = por %p144, %p145
      %p147 = scmp.ne.s32.totalorder %s133, %s134
      %p148 = scmp.eq.s32.totalorder %s34, 1
      %p149 = por %p147, %p148
      %p151 = scmp.ne.s32.totalorder %s134, %s150
      %p152 = scmp.eq.s32.totalorder %s34, 0
      %p153 = por %p151, %p152
      %s154 = ssub.s32 %s35, %s47
      %p155 = scmp.eq.s32.totalorder %s154, 0
      %s157 = sadd.s32 %s156, 1
      %s158 = scalar_select %p155, %s156, %s157
      %p161 = pneg %p155
      %p162 = scmp.eq.s32.totalorder %s28, 1
      %p163 = por %p161, %p162
      %p164 = scmp.ne.s32.totalorder %s156, %s159
      %p165 = scmp.eq.s32.totalorder %s28, 0
      %p166 = por %p164, %p165
      %p167 = scmp.ne.s32.totalorder %s156, %s159
      %p168 = scmp.eq.s32.totalorder %s33, 1
      %p169 = por %p167, %p168
      %p170 = scmp.ne.s32.totalorder %s159, %s160
      %p171 = scmp.eq.s32.totalorder %s33, 0
      %p172 = por %p170, %p171
      %p173 = scmp.ne.s32.totalorder %s159, %s160
      %p174 = scmp.eq.s32.totalorder %s34, 1
      %p175 = por %p173, %p174
      %p177 = scmp.ne.s32.totalorder %s160, %s176
      %p178 = scmp.eq.s32.totalorder %s34, 0
      %p179 = por %p177, %p178
      %s180 = ssub.s32 %s35, %s47
      %p181 = scmp.eq.s32.totalorder %s180, 0
      %s183 = sadd.s32 %s182, 1
      %s184 = scalar_select %p181, %s182, %s183
      %p187 = pneg %p181
      %p188 = scmp.eq.s32.totalorder %s28, 1
      %p189 = por %p187, %p188
      %p190 = scmp.ne.s32.totalorder %s182, %s185
      %p191 = scmp.eq.s32.totalorder %s28, 0
      %p192 = por %p190, %p191
      %p193 = scmp.ne.s32.totalorder %s182, %s185
      %p194 = scmp.eq.s32.totalorder %s33, 1
      %p195 = por %p193, %p194
      %p196 = scmp.ne.s32.totalorder %s185, %s186
      %p197 = scmp.eq.s32.totalorder %s33, 0
      %p198 = por %p196, %p197
      %p199 = scmp.ne.s32.totalorder %s185, %s186
      %p200 = scmp.eq.s32.totalorder %s34, 1
      %p201 = por %p199, %p200
      %p203 = scmp.ne.s32.totalorder %s186, %s202
      %p204 = scmp.eq.s32.totalorder %s34, 0
      %p205 = por %p203, %p204
      %s206 = ssub.s32 %s35, %s47
      %p207 = scmp.eq.s32.totalorder %s206, 0
      %s209 = sadd.s32 %s208, 1
      %s210 = scalar_select %p207, %s208, %s209
      %p213 = pneg %p207
      %p214 = scmp.eq.s32.totalorder %s28, 1
      %p215 = por %p213, %p214
      %p216 = scmp.ne.s32.totalorder %s208, %s211
      %p217 = scmp.eq.s32.totalorder %s28, 0
      %p218 = por %p216, %p217
      %p219 = scmp.ne.s32.totalorder %s208, %s211
      %p220 = scmp.eq.s32.totalorder %s33, 1
      %p221 = por %p219, %p220
      %p222 = scmp.ne.s32.totalorder %s211, %s212
      %p223 = scmp.eq.s32.totalorder %s33, 0
      %p224 = por %p222, %p223
      %p225 = scmp.ne.s32.totalorder %s211, %s212
      %p226 = scmp.eq.s32.totalorder %s34, 1
      %p227 = por %p225, %p226
      %p229 = scmp.ne.s32.totalorder %s212, %s228
      %p230 = scmp.eq.s32.totalorder %s34, 0
      %p231 = por %p229, %p230
      %s232 = ssub.s32 %s35, %s47
      %p233 = scmp.eq.s32.totalorder %s232, 0
      %s235 = sadd.s32 %s234, 1
      %s236 = scalar_select %p233, %s234, %s235
      %p239 = pneg %p233
      %p240 = scmp.eq.s32.totalorder %s28, 1
      %p241 = por %p239, %p240
      %p242 = scmp.ne.s32.totalorder %s234, %s237
      %p243 = scmp.eq.s32.totalorder %s28, 0
      %p244 = por %p242, %p243
      %p245 = scmp.ne.s32.totalorder %s234, %s237
      %p246 = scmp.eq.s32.totalorder %s33, 1
      %p247 = por %p245, %p246
      %p248 = scmp.ne.s32.totalorder %s237, %s238
      %p249 = scmp.eq.s32.totalorder %s33, 0
      %p250 = por %p248, %p249
      %p251 = scmp.ne.s32.totalorder %s237, %s238
      %p252 = scmp.eq.s32.totalorder %s34, 1
      %p253 = por %p251, %p252
      %p255 = scmp.ne.s32.totalorder %s238, %s254
      %p256 = scmp.eq.s32.totalorder %s34, 0
      %p257 = por %p255, %p256
      %s258 = ssub.s32 %s35, %s47
      %p259 = scmp.eq.s32.totalorder %s258, 0
      %s261 = sadd.s32 %s260, 1
      %s262 = scalar_select %p259, %s260, %s261
      %p265 = pneg %p259
      %p266 = scmp.eq.s32.totalorder %s28, 1
      %p267 = por %p265, %p266
      %p268 = scmp.ne.s32.totalorder %s260, %s263
      %p269 = scmp.eq.s32.totalorder %s28, 0
      %p270 = por %p268, %p269
      %p271 = scmp.ne.s32.totalorder %s260, %s263
      %p272 = scmp.eq.s32.totalorder %s33, 1
      %p273 = por %p271, %p272
      %p274 = scmp.ne.s32.totalorder %s263, %s264
      %p275 = scmp.eq.s32.totalorder %s33, 0
      %p276 = por %p274, %p275
      %p277 = scmp.ne.s32.totalorder %s263, %s264
      %p278 = scmp.eq.s32.totalorder %s34, 1
      %p279 = por %p277, %p278
      %p281 = scmp.ne.s32.totalorder %s264, %s280
      %p282 = scmp.eq.s32.totalorder %s34, 0
      %p283 = por %p281, %p282
      %s284 = ssub.s32 %s35, %s47
      %p285 = scmp.eq.s32.totalorder %s284, 0
      %s287 = sadd.s32 %s286, 1
      %s288 = scalar_select %p285, %s286, %s287
      %p291 = pneg %p285
      %p292 = scmp.eq.s32.totalorder %s28, 1
      %p293 = por %p291, %p292
      %p294 = scmp.ne.s32.totalorder %s286, %s289
      %p295 = scmp.eq.s32.totalorder %s28, 0
      %p296 = por %p294, %p295
      %p297 = scmp.ne.s32.totalorder %s286, %s289
      %p298 = scmp.eq.s32.totalorder %s33, 1
      %p299 = por %p297, %p298
      %p300 = scmp.ne.s32.totalorder %s289, %s290
      %p301 = scmp.eq.s32.totalorder %s33, 0
      %p302 = por %p300, %p301
      %p303 = scmp.ne.s32.totalorder %s289, %s290
      %p304 = scmp.eq.s32.totalorder %s34, 1
      %p305 = por %p303, %p304
      %p307 = scmp.ne.s32.totalorder %s290, %s306
      %p308 = scmp.eq.s32.totalorder %s34, 0
      %p309 = por %p307, %p308
      %s310 = ssub.s32 %s35, %s47
      %s311 = ssub.s32 %s36, %s43
      %s312 = sor.u32 %s310, %s311
      %p313 = scmp.eq.s32.totalorder %s312, 0
      %s315 = sadd.s32 %s314, 1
      %s316 = scalar_select %p313, %s314, %s315
      %p319 = pneg %p313
      %p320 = scmp.eq.s32.totalorder %s28, 1
      %p321 = por %p319, %p320
      %p322 = scmp.ne.s32.totalorder %s314, %s317
      %p323 = scmp.eq.s32.totalorder %s28, 0
      %p324 = por %p322, %p323
      %p325 = scmp.ne.s32.totalorder %s314, %s317
      %p326 = scmp.eq.s32.totalorder %s33, 1
      %p327 = por %p325, %p326
      %p328 = scmp.ne.s32.totalorder %s317, %s318
      %p329 = scmp.eq.s32.totalorder %s33, 0
      %p330 = por %p328, %p329
      %p331 = scmp.ne.s32.totalorder %s317, %s318
      %p332 = scmp.eq.s32.totalorder %s34, 1
      %p333 = por %p331, %p332
      %p335 = scmp.ne.s32.totalorder %s318, %s334
      %p336 = scmp.eq.s32.totalorder %s34, 0
      %p337 = por %p335, %p336
      %p338 = scmp.le.s32.totalorder 1, %s28
      %p339 = scmp.lt.s32.totalorder %s28, 3
      %p340 = pnand %p338, %p339
      %p341 = pneg %p340
      // Predicated region
      $region9: #{tpu_custom_call.1} parent=5 // pred_check
        _
      $region10: #{tpu_custom_call.1} parent=5 // pred_check_branch
        %343 = sbr.rel (%p340) target = $region12
      $region11: #{tpu_custom_call.1} parent=5 // pred_region
        %s344 = ssub.s32 %s28, 1
      $region12: #{tpu_custom_call.1} parent=5 // pred_fallthru
        _
      %p345 = scmp.lt.s32.totalorder %s28, 2
      // Predicated region
      $region13: #{tpu_custom_call.1} parent=5 // pred_check
        %p346 = pneg %p345
      $region14: #{tpu_custom_call.1} parent=5 // pred_check_branch
        %348 = sbr.rel (%p346) target = $region16
      $region15: #{tpu_custom_call.1} parent=5 // pred_region
        // Predicated region
        $region17: #{tpu_custom_call.1} parent=15 // pred_check
          %p349 = pneg %p62
        $region18: #{tpu_custom_call.1} parent=15 // pred_check_branch
          %351 = sbr.rel (%p349) target = $region20
        $region19: #{tpu_custom_call.1} parent=15 // pred_region
          %s352 = sand.u32 %s52, 1
          %s353 = scalar_lea.sflag [#allocation3], %s352
          %s354 = sand.u32 %s52, 1
          %s355 = smul.addr %s354, 8
          %s356 = scalar_lea.vmem [#allocation2], %s355
          %s357 = smul.u32 2, %s36
          %359 = vsyncadd %s353, 0
          %s360 = smul.addr %s35, 2
          %s361 = sadd.s32 %s357, %s360
          %s362 = smul.addr %s361, 4
          %s363 = scalar_lea.hbm %s0, %s362
          %s364 = sshll.u32 %s363, 4
          %s365 = int_to_ptr.hbm [resolvable:$true] %s364
          %s366 = sshll.u32 %s356, 4
          %s367 = int_to_ptr.vmem [resolvable:$true] %s366
          %372 = dma.hbm_to_vmem [thread:$0]  %s365, 128, %s367, %s353, 64, 64, 4
        $region20: #{tpu_custom_call.1} parent=15 // pred_fallthru
          _
        // Predicated region
        $region21: #{tpu_custom_call.1} parent=15 // pred_check
          %p373 = pneg %p88
        $region22: #{tpu_custom_call.1} parent=15 // pred_check_branch
          %375 = sbr.rel (%p373) target = $region24
        $region23: #{tpu_custom_call.1} parent=15 // pred_region
          %s376 = sand.u32 %s28, 1
          %s377 = scalar_lea.sflag [#allocation6], %s376
          %s378 = sand.u32 %s78, 1
          %s379 = smul.addr %s378, 8
          %s380 = scalar_lea.vmem [#allocation5], %s379
          %382 = vsyncadd %s377, 0
          %s383 = smul.addr %s35, 2
          %s384 = smul.addr %s383, 4
          %s385 = scalar_lea.hbm %s1, %s384
          %s386 = sshll.u32 %s385, 4
          %s387 = int_to_ptr.hbm [resolvable:$true] %s386
          %s388 = sshll.u32 %s380, 4
          %s389 = int_to_ptr.vmem [resolvable:$true] %s388
          %394 = dma.hbm_to_vmem [thread:$0]  %s387, 128, %s389, %s377, 64, 64, 4
        $region24: #{tpu_custom_call.1} parent=15 // pred_fallthru
          _
        // Predicated region
        $region25: #{tpu_custom_call.1} parent=15 // pred_check
          %p395 = pneg %p114
        $region26: #{tpu_custom_call.1} parent=15 // pred_check_branch
          %397 = sbr.rel (%p395) target = $region28
        $region27: #{tpu_custom_call.1} parent=15 // pred_region
          %p398 = scmp.lt.s32.totalorder %s35, 1
          %s399 = scalar_select %p398, %s35, 1
          %s400 = smul.addr %s399, 4
          %s401 = smul.addr %s400, 4
          %s402 = scalar_lea.vmem %s2, %s401
        $region28: #{tpu_custom_call.1} parent=15 // pred_fallthru
          _
        // Predicated region
        $region29: #{tpu_custom_call.1} parent=15 // pred_check
          %p403 = pneg %p140
        $region30: #{tpu_custom_call.1} parent=15 // pred_check_branch
          %405 = sbr.rel (%p403) target = $region32
        $region31: #{tpu_custom_call.1} parent=15 // pred_region
          %p406 = scmp.lt.s32.totalorder %s35, 1
          %s407 = scalar_select %p406, %s35, 1
          %s408 = smul.addr %s407, 4
          %s409 = smul.addr %s408, 4
          %s410 = scalar_lea.vmem %s3, %s409
        $region32: #{tpu_custom_call.1} parent=15 // pred_fallthru
          _
        // Predicated region
        $region33: #{tpu_custom_call.1} parent=15 // pred_check
          %p411 = pneg %p166
        $region34: #{tpu_custom_call.1} parent=15 // pred_check_branch
          %413 = sbr.rel (%p411) target = $region36
        $region35: #{tpu_custom_call.1} parent=15 // pred_region
          %p414 = scmp.lt.s32.totalorder %s35, 1
          %s415 = scalar_select %p414, %s35, 1
          %s416 = smul.addr %s415, 4
          %s417 = smul.addr %s416, 4
          %s418 = scalar_lea.vmem %s4, %s417
        $region36: #{tpu_custom_call.1} parent=15 // pred_fallthru
          _
        // Predicated region
        $region37: #{tpu_custom_call.1} parent=15 // pred_check
          %p419 = pneg %p192
        $region38: #{tpu_custom_call.1} parent=15 // pred_check_branch
          %421 = sbr.rel (%p419) target = $region40
        $region39: #{tpu_custom_call.1} parent=15 // pred_region
          %s422 = sand.u32 %s28, 1
          %s423 = scalar_lea.sflag [#allocation6], %s422
          %s424 = sand.u32 %s182, 1
          %s425 = smul.addr %s424, 8
          %s426 = scalar_lea.vmem [#allocation7], %s425
          %428 = vsyncadd %s423, 0
          %s429 = smul.addr %s35, 2
          %s430 = smul.addr %s429, 4
          %s431 = scalar_lea.hbm %s5, %s430
          %s432 = sshll.u32 %s431, 4
          %s433 = int_to_ptr.hbm [resolvable:$true] %s432
          %s434 = sshll.u32 %s426, 4
          %s435 = int_to_ptr.vmem [resolvable:$true] %s434
          %440 = dma.hbm_to_vmem [thread:$0]  %s433, 128, %s435, %s423, 64, 64, 4
        $region40: #{tpu_custom_call.1} parent=15 // pred_fallthru
          _
        // Predicated region
        $region41: #{tpu_custom_call.1} parent=15 // pred_check
          %p441 = pneg %p218
        $region42: #{tpu_custom_call.1} parent=15 // pred_check_branch
          %443 = sbr.rel (%p441) target = $region44
        $region43: #{tpu_custom_call.1} parent=15 // pred_region
          %p444 = scmp.lt.s32.totalorder %s35, 1
          %s445 = scalar_select %p444, %s35, 1
          %s446 = smul.addr %s445, 4
          %s447 = smul.addr %s446, 4
          %s448 = scalar_lea.vmem %s6, %s447
        $region44: #{tpu_custom_call.1} parent=15 // pred_fallthru
          _
        // Predicated region
        $region45: #{tpu_custom_call.1} parent=15 // pred_check
          %p449 = pneg %p244
        $region46: #{tpu_custom_call.1} parent=15 // pred_check_branch
          %451 = sbr.rel (%p449) target = $region48
        $region47: #{tpu_custom_call.1} parent=15 // pred_region
          %s452 = sand.u32 %s28, 1
          %s453 = scalar_lea.sflag [#allocation9], %s452
          %s454 = sand.u32 %s234, 1
          %s455 = smul.addr %s454, 16
          %s456 = scalar_lea.vmem [#allocation8], %s455
          %458 = vsyncadd %s453, 0
          %s459 = smul.addr %s35, 4
          %s460 = smul.addr %s459, 4
          %s461 = scalar_lea.hbm %s7, %s460
          %s462 = sshll.u32 %s461, 4
          %s463 = int_to_ptr.hbm [resolvable:$true] %s462
          %s464 = sshll.u32 %s456, 4
          %s465 = int_to_ptr.vmem [resolvable:$true] %s464
          %470 = dma.hbm_to_vmem [thread:$0]  %s463, 256, %s465, %s453, 64, 64, 4
        $region48: #{tpu_custom_call.1} parent=15 // pred_fallthru
          _
        // Predicated region
        $region49: #{tpu_custom_call.1} parent=15 // pred_check
          %p471 = pneg %p270
        $region50: #{tpu_custom_call.1} parent=15 // pred_check_branch
          %473 = sbr.rel (%p471) target = $region52
        $region51: #{tpu_custom_call.1} parent=15 // pred_region
          %p474 = scmp.lt.s32.totalorder %s35, 1
          %s475 = scalar_select %p474, %s35, 1
          %s476 = smul.addr %s475, 4
          %s477 = smul.addr %s476, 4
          %s478 = scalar_lea.vmem %s8, %s477
        $region52: #{tpu_custom_call.1} parent=15 // pred_fallthru
          _
        // Predicated region
        $region53: #{tpu_custom_call.1} parent=15 // pred_check
          %p479 = pneg %p296
        $region54: #{tpu_custom_call.1} parent=15 // pred_check_branch
          %481 = sbr.rel (%p479) target = $region56
        $region55: #{tpu_custom_call.1} parent=15 // pred_region
          %s482 = sand.u32 %s28, 1
          %s483 = scalar_lea.sflag [#allocation9], %s482
          %s484 = sand.u32 %s286, 1
          %s485 = smul.addr %s484, 8
          %s486 = scalar_lea.vmem [#allocation10], %s485
          %488 = vsyncadd %s483, 0
          %s489 = smul.addr %s35, 8
          %s490 = scalar_lea.hbm %s9, %s489
          %s492 = sshll.u32 %s490, 4
          %s493 = int_to_ptr.hbm [resolvable:$true] %s492
          %s494 = sshll.u32 %s486, 4
          %s495 = int_to_ptr.vmem [resolvable:$true] %s494
          %497 = dma.hbm_to_vmem [thread:$0]  %s493, 128, %s495, %s483
        $region56: #{tpu_custom_call.1} parent=15 // pred_fallthru
          _
      $region16: #{tpu_custom_call.1} parent=5 // pred_fallthru
        _
      %p498 = scmp.le.s32.totalorder 1, %s28
      %p499 = scmp.lt.s32.totalorder %s28, 3
      %p500 = pnand %p498, %p499
      %p501 = pneg %p500
      // Predicated region
      $region57: #{tpu_custom_call.1} parent=5 // pred_check
        _
      $region58: #{tpu_custom_call.1} parent=5 // pred_check_branch
        %503 = sbr.rel (%p500) target = $region60
      $region59: #{tpu_custom_call.1} parent=5 // pred_region
        %s504 = ssub.s32 %s28, 1
        %s505 = sand.u32 %s55, 1
        %s506 = scalar_lea.sflag [#allocation3], %s505
        %s507 = sand.u32 %s55, 1
        %s508 = smul.addr %s507, 8
        %s509 = scalar_lea.vmem [#allocation2], %s508
        // Predicated region
        $region61: #{tpu_custom_call.1} parent=59 // pred_check
          %p510 = pneg %p68
        $region62: #{tpu_custom_call.1} parent=59 // pred_check_branch
          %512 = sbr.rel (%p510) target = $region64
        $region63: #{tpu_custom_call.1} parent=59 // pred_region
          %514 = dma.done %s506, 128
        $region64: #{tpu_custom_call.1} parent=59 // pred_fallthru
          _
        %s515 = sand.u32 %s33, 1
        %s516 = scalar_lea.sflag [#allocation6], %s515
        %s517 = sand.u32 %s81, 1
        %s518 = smul.addr %s517, 8
        %s519 = scalar_lea.vmem [#allocation5], %s518
        // Predicated region
        $region65: #{tpu_custom_call.1} parent=59 // pred_check
          %p520 = pneg %p94
        $region66: #{tpu_custom_call.1} parent=59 // pred_check_branch
          %522 = sbr.rel (%p520) target = $region68
        $region67: #{tpu_custom_call.1} parent=59 // pred_region
          %524 = dma.done %s516, 128
        $region68: #{tpu_custom_call.1} parent=59 // pred_fallthru
          _
        %s525 = sand.u32 %s33, 1
        %s526 = scalar_lea.sflag [#allocation6], %s525
        %s527 = sand.u32 %s185, 1
        %s528 = smul.addr %s527, 8
        %s529 = scalar_lea.vmem [#allocation7], %s528
        // Predicated region
        $region69: #{tpu_custom_call.1} parent=59 // pred_check
          %p530 = pneg %p198
        $region70: #{tpu_custom_call.1} parent=59 // pred_check_branch
          %532 = sbr.rel (%p530) target = $region72
        $region71: #{tpu_custom_call.1} parent=59 // pred_region
          %534 = dma.done %s526, 128
        $region72: #{tpu_custom_call.1} parent=59 // pred_fallthru
          _
        %s535 = sand.u32 %s33, 1
        %s536 = scalar_lea.sflag [#allocation9], %s535
        %s537 = sand.u32 %s237, 1
        %s538 = smul.addr %s537, 16
        %s539 = scalar_lea.vmem [#allocation8], %s538
        // Predicated region
        $region73: #{tpu_custom_call.1} parent=59 // pred_check
          %p540 = pneg %p250
        $region74: #{tpu_custom_call.1} parent=59 // pred_check_branch
          %542 = sbr.rel (%p540) target = $region76
        $region75: #{tpu_custom_call.1} parent=59 // pred_region
          %544 = dma.done %s536, 256
        $region76: #{tpu_custom_call.1} parent=59 // pred_fallthru
          _
        %s545 = sand.u32 %s33, 1
        %s546 = scalar_lea.sflag [#allocation9], %s545
        %s547 = sand.u32 %s289, 1
        %s548 = smul.addr %s547, 8
        %s549 = scalar_lea.vmem [#allocation10], %s548
        // Predicated region
        $region77: #{tpu_custom_call.1} parent=59 // pred_check
          %p550 = pneg %p302
        $region78: #{tpu_custom_call.1} parent=59 // pred_check_branch
          %552 = sbr.rel (%p550) target = $region80
        $region79: #{tpu_custom_call.1} parent=59 // pred_region
          %554 = dma.done %s546, 128
        $region80: #{tpu_custom_call.1} parent=59 // pred_fallthru
          _
        %s555 = sand.u32 %s55, 1
        %s556 = scalar_lea.sflag [#allocation3], %s555
        %s557 = sand.u32 %s55, 1
        %s558 = smul.addr %s557, 8
        %s559 = scalar_lea.vmem [#allocation2], %s558
        %p560 = pneg %p68
        %p561 = pneg %p65
        %s562 = sand.u32 %s33, 1
        %s563 = scalar_lea.sflag [#allocation6], %s562
        %s564 = sand.u32 %s81, 1
        %s565 = smul.addr %s564, 8
        %s566 = scalar_lea.vmem [#allocation5], %s565
        %p567 = pneg %p94
        %p568 = pneg %p91
        %p569 = scmp.lt.s32.totalorder %s37, 1
        %s570 = scalar_select %p569, %s37, 1
        %s571 = smul.addr %s570, 4
        %s572 = smul.addr %s571, 4
        %s573 = scalar_lea.vmem %s2, %s572
        %p574 = pneg %p120
        %p575 = pneg %p117
        %p576 = scmp.lt.s32.totalorder %s37, 1
        %s577 = scalar_select %p576, %s37, 1
        %s578 = smul.addr %s577, 4
        %s579 = smul.addr %s578, 4
        %s580 = scalar_lea.vmem %s3, %s579
        %p581 = pneg %p146
        %p582 = pneg %p143
        %p583 = scmp.lt.s32.totalorder %s37, 1
        %s584 = scalar_select %p583, %s37, 1
        %s585 = smul.addr %s584, 4
        %s586 = smul.addr %s585, 4
        %s587 = scalar_lea.vmem %s4, %s586
        %p588 = pneg %p172
        %p589 = pneg %p169
        %s590 = sand.u32 %s33, 1
        %s591 = scalar_lea.sflag [#allocation6], %s590
        %s592 = sand.u32 %s185, 1
        %s593 = smul.addr %s592, 8
        %s594 = scalar_lea.vmem [#allocation7], %s593
        %p595 = pneg %p198
        %p596 = pneg %p195
        %p597 = scmp.lt.s32.totalorder %s37, 1
        %s598 = scalar_select %p597, %s37, 1
        %s599 = smul.addr %s598, 4
        %s600 = smul.addr %s599, 4
        %s601 = scalar_lea.vmem %s6, %s600
        %p602 = pneg %p224
        %p603 = pneg %p221
        %s604 = sand.u32 %s33, 1
        %s605 = scalar_lea.sflag [#allocation9], %s604
        %s606 = sand.u32 %s237, 1
        %s607 = smul.addr %s606, 16
        %s608 = scalar_lea.vmem [#allocation8], %s607
        %p609 = pneg %p250
        %p610 = pneg %p247
        %p611 = scmp.lt.s32.totalorder %s37, 1
        %s612 = scalar_select %p611, %s37, 1
        %s613 = smul.addr %s612, 4
        %s614 = smul.addr %s613, 4
        %s615 = scalar_lea.vmem %s8, %s614
        %p616 = pneg %p276
        %p617 = pneg %p273
        %s618 = sand.u32 %s33, 1
        %s619 = scalar_lea.sflag [#allocation9], %s618
        %s620 = sand.u32 %s289, 1
        %s621 = smul.addr %s620, 8
        %s622 = scalar_lea.vmem [#allocation10], %s621
        %p623 = pneg %p302
        %p624 = pneg %p299
        %p625 = pneg %p330
        %p626 = pneg %p327
        %s627 = sand.u32 %s317, 1
        %s628 = scalar_lea.sflag [#allocation4], %s627
        %s629 = sand.u32 %s317, 1
        %s630 = smul.addr %s629, 16
        %s631 = scalar_lea.vmem [#allocation11], %s630
        %s632 = smul.u32 2, %s38
        %p633 = scmp.lt.s32.totalorder %s37, 1
        %s634 = scalar_select %p633, %s37, 1
        %s635 = smul.addr %s634, 4
        %s636 = smul.addr %s635, 4
        %s637 = scalar_lea.vmem %s2, %s636
        %p638 = scmp.lt.s32.totalorder %s37, 1
        %s639 = scalar_select %p638, %s37, 1
        %s640 = smul.addr %s639, 4
        %s641 = smul.addr %s640, 4
        %s642 = scalar_lea.vmem %s3, %s641
        %p643 = scmp.lt.s32.totalorder %s37, 1
        %s644 = scalar_select %p643, %s37, 1
        %s645 = smul.addr %s644, 4
        %s646 = smul.addr %s645, 4
        %s647 = scalar_lea.vmem %s4, %s646
        %p648 = scmp.lt.s32.totalorder %s37, 1
        %s649 = scalar_select %p648, %s37, 1
        %s650 = smul.addr %s649, 4
        %s651 = smul.addr %s650, 4
        %s652 = scalar_lea.vmem %s6, %s651
        %p653 = scmp.lt.s32.totalorder %s37, 1
        %s654 = scalar_select %p653, %s37, 1
        %s655 = smul.addr %s654, 4
        %s656 = smul.addr %s655, 4
        %s657 = scalar_lea.vmem %s8, %s656
        %s658 = smul.u32 2, %s38
        %v660 = vld [vmem:[%s549] sm:$0xff]
        %v661 = vld [vmem:[%s509] sm:$0xf]
        %v662 = vld [vmem:[%s509 + $0x4] sm:$0xf]
        %v663 = vld [vmem:[%s519] sm:$0xf]
        %v664 = vld [vmem:[%s519 + $0x4] sm:$0xf]
        %v665 = vperm.slane %v660, 0
        %v668 = vunpack.c.l.b16 %v661
        %v669 = vunpack.c.l.b16 %v662
        %v670 = vpack.c.b16 %v669, %v668
        %v673 = vunpack.c.l.b16 %v663
        %v674 = vunpack.c.l.b16 %v664
        %v675 = vpack.c.b16 %v674, %v673
        %vm677 = vcmask 130048
        %v679 = vsel %vm677, %v670, 0
        %681 = vmatpush.bf16.msra.mxu0 0
        %682 = vmatpush.bf16.msra.mxu0 0
        %683 = vmatpush.bf16.msra.mxu0 0
        %684 = vmatpush.bf16.msra.mxu0 0
        %685 = vmatpush.bf16.msra.mxu0 0
        %686 = vmatpush.bf16.msra.mxu0 0
        %687 = vmatpush.bf16.msra.mxu0 0
        %688 = vmatpush.bf16.msra.mxu0 %v675
        %689 = vmatmul.bf16.gmra.mxu0 %v679
        %v690 = vpop.f32.mrf.mxu0
        %v691 = vadd.f32 %v665, %v690
        %v692 = vpop.f32.mrf.mxu0
        %v693 = vadd.f32 %v665, %v692
        %694 = vdwg.mxu0
        %v695 = vmax.f32 %v691, 0.0
        %v696 = vmax.f32 %v693, 0.0
        %v697 = vpack.c.bf16 %v696, %v695
        %v698 = vld [vmem:[%s637] sm:$0xf]
        %v699 = vld [vmem:[%s637 + $0x4] sm:$0xf]
        %v700 = vld [vmem:[%s637 + $0x8] sm:$0xf]
        %v701 = vld [vmem:[%s637 + $0xc] sm:$0xf]
        %v702 = vperm.slane %v660, 1
        %v707 = vunpack.c.l.b16 %v698
        %v708 = vunpack.c.l.b16 %v699
        %v709 = vunpack.c.l.b16 %v700
        %v710 = vunpack.c.l.b16 %v701
        %v711 = vpack.c.b16 %v708, %v707
        %v712 = vpack.c.b16 %v710, %v709
        %vm715 = vcmask 261120
        %v717 = vsel %vm715, %v697, 0
        %719 = vmatpush.bf16.msra.mxu0 0
        %720 = vmatpush.bf16.msra.mxu0 0
        %721 = vmatpush.bf16.msra.mxu0 0
        %722 = vmatpush.bf16.msra.mxu0 0
        %723 = vmatpush.bf16.msra.mxu0 0
        %724 = vmatpush.bf16.msra.mxu0 0
        %725 = vmatpush.bf16.msra.mxu0 %v712
        %726 = vmatpush.bf16.msra.mxu0 %v711
        %727 = vmatmul.bf16.gmra.mxu0 %v717
        %v728 = vpop.f32.mrf.mxu0
        %v729 = vadd.f32 %v702, %v728
        %v730 = vpop.f32.mrf.mxu0
        %v731 = vadd.f32 %v702, %v730
        %732 = vdwg.mxu0
        %v733 = vmax.f32 %v729, 0.0
        %v734 = vmax.f32 %v731, 0.0
        %v735 = vpack.c.bf16 %v734, %v733
        %v736 = vld [vmem:[%s642] sm:$0xf]
        %v737 = vld [vmem:[%s642 + $0x4] sm:$0xf]
        %v738 = vld [vmem:[%s642 + $0x8] sm:$0xf]
        %v739 = vld [vmem:[%s642 + $0xc] sm:$0xf]
        %v740 = vperm.slane %v660, 2
        %v745 = vunpack.c.l.b16 %v736
        %v746 = vunpack.c.l.b16 %v737
        %v747 = vunpack.c.l.b16 %v738
        %v748 = vunpack.c.l.b16 %v739
        %v749 = vpack.c.b16 %v746, %v745
        %v750 = vpack.c.b16 %v748, %v747
        %v754 = vsel %vm715, %v735, 0
        %756 = vmatpush.bf16.msra.mxu0 0
        %757 = vmatpush.bf16.msra.mxu0 0
        %758 = vmatpush.bf16.msra.mxu0 0
        %759 = vmatpush.bf16.msra.mxu0 0
        %760 = vmatpush.bf16.msra.mxu0 0
        %761 = vmatpush.bf16.msra.mxu0 0
        %762 = vmatpush.bf16.msra.mxu0 %v750
        %763 = vmatpush.bf16.msra.mxu0 %v749
        %764 = vmatmul.bf16.gmra.mxu0 %v754
        %v765 = vpop.f32.mrf.mxu0
        %v766 = vadd.f32 %v740, %v765
        %v767 = vpop.f32.mrf.mxu0
        %v768 = vadd.f32 %v740, %v767
        %769 = vdwg.mxu0
        %v770 = vmax.f32 %v766, 0.0
        %v771 = vmax.f32 %v768, 0.0
        %v772 = vpack.c.bf16 %v771, %v770
        %v773 = vld [vmem:[%s647] sm:$0xf]
        %v774 = vld [vmem:[%s647 + $0x4] sm:$0xf]
        %v775 = vld [vmem:[%s647 + $0x8] sm:$0xf]
        %v776 = vld [vmem:[%s647 + $0xc] sm:$0xf]
        %v777 = vperm.slane %v660, 3
        %v782 = vunpack.c.l.b16 %v773
        %v783 = vunpack.c.l.b16 %v774
        %v784 = vunpack.c.l.b16 %v775
        %v785 = vunpack.c.l.b16 %v776
        %v786 = vpack.c.b16 %v783, %v782
        %v787 = vpack.c.b16 %v785, %v784
        %v791 = vsel %vm715, %v772, 0
        %793 = vmatpush.bf16.msra.mxu0 0
        %794 = vmatpush.bf16.msra.mxu0 0
        %795 = vmatpush.bf16.msra.mxu0 0
        %796 = vmatpush.bf16.msra.mxu0 0
        %797 = vmatpush.bf16.msra.mxu0 0
        %798 = vmatpush.bf16.msra.mxu0 0
        %799 = vmatpush.bf16.msra.mxu0 %v787
        %800 = vmatpush.bf16.msra.mxu0 %v786
        %801 = vmatmul.bf16.gmra.mxu0 %v791
        %v802 = vpop.f32.mrf.mxu0
        %v803 = vadd.f32 %v777, %v802
        %v804 = vpop.f32.mrf.mxu0
        %v805 = vadd.f32 %v777, %v804
        %806 = vdwg.mxu0
        %v807 = vpack.c.bf16 %v805, %v803
        %v808 = vld [vmem:[%s529] sm:$0xf]
        %v809 = vld [vmem:[%s529 + $0x4] sm:$0xf]
        %v810 = vperm.slane %v660, 4
        %v813 = vunpack.c.l.b16 %v808
        %v814 = vunpack.c.l.b16 %v809
        %v815 = vpack.c.b16 %v814, %v813
        %v818 = vsel %vm677, %v807, 0
        %820 = vmatpush.bf16.msra.mxu0 0
        %821 = vmatpush.bf16.msra.mxu0 0
        %822 = vmatpush.bf16.msra.mxu0 0
        %823 = vmatpush.bf16.msra.mxu0 0
        %824 = vmatpush.bf16.msra.mxu0 0
        %825 = vmatpush.bf16.msra.mxu0 0
        %826 = vmatpush.bf16.msra.mxu0 0
        %827 = vmatpush.bf16.msra.mxu0 %v815
        %828 = vmatmul.bf16.gmra.mxu0 %v818
        %v829 = vpop.f32.mrf.mxu0
        %v830 = vadd.f32 %v810, %v829
        %v831 = vpop.f32.mrf.mxu0
        %v832 = vadd.f32 %v810, %v831
        %833 = vdwg.mxu0
        %v834 = vmax.f32 %v830, 0.0
        %v835 = vmax.f32 %v832, 0.0
        %v836 = vpack.c.bf16 %v835, %v834
        %v837 = vld [vmem:[%s652] sm:$0xf]
        %v838 = vld [vmem:[%s652 + $0x4] sm:$0xf]
        %v839 = vld [vmem:[%s652 + $0x8] sm:$0xf]
        %v840 = vld [vmem:[%s652 + $0xc] sm:$0xf]
        %v841 = vperm.slane %v660, 5
        %v846 = vunpack.c.l.b16 %v837
        %v847 = vunpack.c.l.b16 %v838
        %v848 = vunpack.c.l.b16 %v839
        %v849 = vunpack.c.l.b16 %v840
        %v850 = vpack.c.b16 %v847, %v846
        %v851 = vpack.c.b16 %v849, %v848
        %v855 = vsel %vm715, %v836, 0
        %857 = vmatpush.bf16.msra.mxu0 0
        %858 = vmatpush.bf16.msra.mxu0 0
        %859 = vmatpush.bf16.msra.mxu0 0
        %860 = vmatpush.bf16.msra.mxu0 0
        %861 = vmatpush.bf16.msra.mxu0 0
        %862 = vmatpush.bf16.msra.mxu0 0
        %863 = vmatpush.bf16.msra.mxu0 %v851
        %864 = vmatpush.bf16.msra.mxu0 %v850
        %865 = vmatmul.bf16.gmra.mxu0 %v855
        %v866 = vpop.f32.mrf.mxu0
        %v867 = vadd.f32 %v841, %v866
        %v868 = vpop.f32.mrf.mxu0
        %v869 = vadd.f32 %v841, %v868
        %870 = vdwg.mxu0
        %v871 = vmax.f32 %v867, 0.0
        %v872 = vmax.f32 %v869, 0.0
        %v873 = vpack.c.bf16 %v872, %v871
        %v874 = vld [vmem:[%s539] sm:$0xf]
        %v875 = vld [vmem:[%s539 + $0x4] sm:$0xf]
        %v876 = vld [vmem:[%s539 + $0x8] sm:$0xf]
        %v877 = vld [vmem:[%s539 + $0xc] sm:$0xf]
        %v878 = vperm.slane %v660, 6
        %v883 = vunpack.c.l.b16 %v874
        %v884 = vunpack.c.l.b16 %v875
        %v885 = vunpack.c.l.b16 %v876
        %v886 = vunpack.c.l.b16 %v877
        %v887 = vpack.c.b16 %v884, %v883
        %v888 = vpack.c.b16 %v886, %v885
        %v892 = vsel %vm715, %v873, 0
        %894 = vmatpush.bf16.msra.mxu0 0
        %895 = vmatpush.bf16.msra.mxu0 0
        %896 = vmatpush.bf16.msra.mxu0 0
        %897 = vmatpush.bf16.msra.mxu0 0
        %898 = vmatpush.bf16.msra.mxu0 0
        %899 = vmatpush.bf16.msra.mxu0 0
        %900 = vmatpush.bf16.msra.mxu0 %v888
        %901 = vmatpush.bf16.msra.mxu0 %v887
        %902 = vmatmul.bf16.gmra.mxu0 %v892
        %v903 = vpop.f32.mrf.mxu0
        %v904 = vadd.f32 %v878, %v903
        %v905 = vpop.f32.mrf.mxu0
        %v906 = vadd.f32 %v878, %v905
        %907 = vdwg.mxu0
        %v908 = vmax.f32 %v904, 0.0
        %v909 = vmax.f32 %v906, 0.0
        %v910 = vpack.c.bf16 %v909, %v908
        %v911 = vld [vmem:[%s657] sm:$0xf]
        %v912 = vld [vmem:[%s657 + $0x4] sm:$0xf]
        %v913 = vld [vmem:[%s657 + $0x8] sm:$0xf]
        %v914 = vld [vmem:[%s657 + $0xc] sm:$0xf]
        %v915 = vperm.slane %v660, 7
        %v920 = vunpack.c.l.b16 %v911
        %v921 = vunpack.c.l.b16 %v912
        %v922 = vunpack.c.l.b16 %v913
        %v923 = vunpack.c.l.b16 %v914
        %v924 = vpack.c.b16 %v921, %v920
        %v925 = vpack.c.b16 %v923, %v922
        %v929 = vsel %vm715, %v910, 0
        %931 = vmatpush.bf16.msra.mxu0 0
        %932 = vmatpush.bf16.msra.mxu0 0
        %933 = vmatpush.bf16.msra.mxu0 0
        %934 = vmatpush.bf16.msra.mxu0 0
        %935 = vmatpush.bf16.msra.mxu0 0
        %936 = vmatpush.bf16.msra.mxu0 0
        %937 = vmatpush.bf16.msra.mxu0 %v925
        %938 = vmatpush.bf16.msra.mxu0 %v924
        %939 = vmatmul.bf16.gmra.mxu0 %v929
        %v940 = vpop.f32.mrf.mxu0
        %v941 = vadd.f32 %v915, %v940
        %v942 = vpop.f32.mrf.mxu0
        %v943 = vadd.f32 %v915, %v942
        %944 = vdwg.mxu0
        %v945 = vxor.u32 %v941, 2147483648
        %v946 = vxor.u32 %v943, 2147483648
        %v947 = vmul.f32 %v945, 1.442695
        %v948 = vpow.pop %v947
        %v949 = vmul.f32 %v946, 1.442695
        %v950 = vpow.pop %v949
        %v951 = vadd.f32 %v948, 1.0
        %v952 = vadd.f32 %v950, 1.0
        %v953 = vrcp.pop %v951
        %v954 = vmul.f32 %v951, %v953
        %v955 = vsub.f32 1.0, %v954
        %v956 = vmul.f32 %v953, %v955
        %v957 = vadd.f32 %v953, %v956
        %vm958 = vweird.f32 %v951
        %vm959 = vweird.f32 %v953
        %vm960 = vmor %vm958, %vm959
        %v961 = vsel %vm960, %v953, %v957
        %v962 = vand.u32 2147483647, %v951
        %vm963 = vcmp.eq.f32.partialorder %v962, 8.507059e+37
        %v964 = vand.u32 %v951, 2147483648
        %v965 = vor.u32 1.1754944e-38, %v964
        %v966 = vsel %vm963, %v965, %v961
        %v967 = vmul.f32 1.0, %v966
        %v968 = vrcp.pop %v952
        %v969 = vmul.f32 %v952, %v968
        %v970 = vsub.f32 1.0, %v969
        %v971 = vmul.f32 %v968, %v970
        %v972 = vadd.f32 %v968, %v971
        %vm973 = vweird.f32 %v952
        %vm974 = vweird.f32 %v968
        %vm975 = vmor %vm973, %vm974
        %v976 = vsel %vm975, %v968, %v972
        %v977 = vand.u32 2147483647, %v952
        %vm978 = vcmp.eq.f32.partialorder %v977, 8.507059e+37
        %v979 = vand.u32 %v952, 2147483648
        %v980 = vor.u32 1.1754944e-38, %v979
        %v981 = vsel %vm978, %v980, %v976
        %v982 = vmul.f32 1.0, %v981
        %983 = vst.msk [vmem:[%s631] sm:$0xff] %vm677, %v967
        %984 = vst.msk [vmem:[%s631 + $0x8] sm:$0xff] %vm677, %v982
        %s985 = sand.u32 %s317, 1
        %s986 = scalar_lea.sflag [#allocation4], %s985
        %s987 = sand.u32 %s317, 1
        %s988 = smul.addr %s987, 16
        %s989 = scalar_lea.vmem [#allocation11], %s988
        // Predicated region
        $region81: #{tpu_custom_call.1} parent=59 // pred_check
          %p990 = pneg %p327
        $region82: #{tpu_custom_call.1} parent=59 // pred_check_branch
          %992 = sbr.rel (%p990) target = $region84
        $region83: #{tpu_custom_call.1} parent=59 // pred_region
          %s993 = smul.u32 2, %s38
          %995 = vsyncadd %s986, 0
          %s996 = smul.addr %s37, 2
          %s997 = sadd.s32 %s993, %s996
          %s998 = smul.addr %s997, 8
          %s999 = scalar_lea.hbm %s10, %s998
          %s1000 = sshll.u32 %s989, 4
          %s1001 = int_to_ptr.vmem [resolvable:$true] %s1000
          %s1002 = sshll.u32 %s999, 4
          %s1003 = int_to_ptr.hbm [resolvable:$true] %s1002
          %1008 = dma.vmem_to_hbm [thread:$0]  %s1001, 256, %s1003, %s986, 128, 128, 8
        $region84: #{tpu_custom_call.1} parent=59 // pred_fallthru
          _
      $region60: #{tpu_custom_call.1} parent=5 // pred_fallthru
        _
      %p1009 = scmp.le.s32.totalorder 2, %s28
      // Predicated region
      $region85: #{tpu_custom_call.1} parent=5 // pred_check
        %p1010 = pneg %p1009
      $region86: #{tpu_custom_call.1} parent=5 // pred_check_branch
        %1012 = sbr.rel (%p1010) target = $region88
      $region87: #{tpu_custom_call.1} parent=5 // pred_region
        %s1013 = ssub.s32 %s28, 2
        // Predicated region
        $region89: #{tpu_custom_call.1} parent=87 // pred_check
          %p1014 = pneg %p333
        $region90: #{tpu_custom_call.1} parent=87 // pred_check_branch
          %1016 = sbr.rel (%p1014) target = $region92
        $region91: #{tpu_custom_call.1} parent=87 // pred_region
          %s1017 = sand.u32 %s318, 1
          %s1018 = scalar_lea.sflag [#allocation4], %s1017
          %s1019 = sand.u32 %s318, 1
          %s1020 = smul.addr %s1019, 16
          %s1021 = scalar_lea.vmem [#allocation11], %s1020
          %1023 = dma.done %s1018, 256
        $region92: #{tpu_custom_call.1} parent=87 // pred_fallthru
          _
      $region88: #{tpu_custom_call.1} parent=5 // pred_fallthru
        _
    $region6: #{tpu_custom_call.1} parent=1 // loop_footer
      %s32 = sadd.s32 1, %s28
    $region7: #{tpu_custom_call.1} parent=1 // loop_footer_branch
      %27 = sbr.rel target = $region3
    $region8: #{tpu_custom_call.1} parent=1 // loop_exit
      _
    %1024 = vsyncpa [#allocation3], 1
    %s1025 = scalar_lea.sflag [#allocation3], 1
    %1026 = vsyncpa %s1025, 1
    %1027 = vsyncpa [#allocation6], 1
    %s1028 = scalar_lea.sflag [#allocation6], 1
    %1029 = vsyncpa %s1028, 1
    %1030 = vsyncpa [#allocation9], 1
    %s1031 = scalar_lea.sflag [#allocation9], 1
    %1032 = vsyncpa %s1031, 1
    %1033 = vsyncpa [#allocation4], 1
    %s1034 = scalar_lea.sflag [#allocation4], 1
    %1035 = vsyncpa %s1034, 1

</llo_original>
